<compile_context>
chip_gen: v7x
topology: tpu7x:2x2x1
jax: 0.10.0
libtpu: 0.0.40
codegen_flags: <defaults>
</compile_context>

<pallas_src>
import functools

import jax
import jax.numpy as jnp
from jax.experimental import pallas as pl
from jax.experimental.pallas import tpu as pltpu

BN_EPS = 1e-5


def _round_up(a: int, b: int) -> int:
    return (a + b - 1) // b * b


def _vmem_capacity_bytes() -> int:
    try:
        return int(pltpu.get_tpu_info().vmem_capacity_bytes)
    except Exception:
        return 64 << 20  # conservative: v7x per-TensorCore VMEM


def _footprint_bytes(tile_n: int, tile_co: int, c_in_p: int) -> int:
    return (2 * tile_n * c_in_p * 4        # x tile, f32, double-buffered
            + 2 * c_in_p * tile_co * 2     # weight tile, bf16, double-buffered
            + 2 * tile_n * tile_co * 4     # output tile, f32, double-buffered
            + tile_n * c_in_p * 2          # cached bf16 activation scratch
            + 4 * (2 * c_in_p + tile_co) * 4)  # scale/shift/bias (tiny)


def _pick_tiles(n: int, c_in_p: int, c_out_p: int, budget: int):
    # Batch tile: multiple of 16 (bf16 sublane packing for the scratch); prefer
    # 256-multiples (v6e/v7x MXU passes) and keep >=2 tiles when work allows.
    if n < 256:
        tile_n = _round_up(n, 16)
    elif n < 1024:
        tile_n = 256
    else:
        tile_n = 512
    tile_co = min(c_out_p, 512)

    # Shrink until the double-buffered working set fits the VMEM budget.
    while _footprint_bytes(tile_n, tile_co, c_in_p) > budget:
        if tile_co >= tile_n and tile_co > 128:
            tile_co = max(128, _round_up(tile_co // 2, 128))
        elif tile_n > 16:
            tile_n = max(16, _round_up(tile_n // 2, 16))
        else:
            break
    return tile_n, tile_co


def dense_block_kernel(x_ref, scale_ref, shift_ref, w_ref, b_ref, o_ref, h_ref):
    # Fill the activation cache once per batch tile (j == 0). The j axis is
    # "arbitrary" (sequential on a core), so the cache stays valid for every
    # output-feature tile of this batch tile.
    @pl.when(pl.program_id(1) == 0)
    def _():
        x = x_ref[...]                                           # (tile_n, c_in_p) f32
        h = jnp.maximum(x * scale_ref[...] + shift_ref[...], jnp.float32(0.0))
        h_ref[...] = h.astype(h_ref.dtype)                       # one f32->bf16 cast / tile

    # Linear: cached bf16 activation @ bf16 weight on the MXU, f32 accumulation.
    y = jnp.dot(h_ref[...], w_ref[...],
                preferred_element_type=jnp.float32) + b_ref[...]
    # Dropout: identity in eval mode.
    o_ref[...] = y.astype(o_ref.dtype)


@functools.partial(jax.jit, static_argnames=("matmul_dtype",))
def dense_block(x, gamma, beta, running_mean, running_var, weight, bias,
                *, matmul_dtype=jnp.bfloat16):
    """x: (N, C_in) f32. weight: (C_in, C_out) (transpose of PyTorch's (out, in)).

    Returns (N, C_out) f32.
    """
    n, c_in = x.shape
    c_out = weight.shape[1]

    # --- Fold BatchNorm (eval) into a single scale/shift, once, outside the grid. ---
    inv_std = jax.lax.rsqrt(running_var.astype(jnp.float32) + BN_EPS)
    scale = gamma.astype(jnp.float32) * inv_std                   # (C_in,)
    shift = beta.astype(jnp.float32) - running_mean.astype(jnp.float32) * scale

    # --- Tile sizing (static, shape-driven, generation-aware VMEM budget). ---
    c_in_p = _round_up(c_in, 128)
    c_out_p0 = _round_up(c_out, 128)
    budget = int(_vmem_capacity_bytes() * 0.7)
    tile_n, tile_co = _pick_tiles(n, c_in_p, c_out_p0, budget)
    n_p = _round_up(n, tile_n)
    c_out_p = _round_up(c_out, tile_co)

    # --- Pad to lane-dense, MXU-friendly shapes (skip copies when already aligned).
    #     Padded features have scale=shift=0 => post-ReLU activation 0; padded weight
    #     rows/cols are 0 => no contribution. Padded batch rows are sliced off. ---
    if n_p == n and c_in_p == c_in:
        x_p = x.astype(jnp.float32)
    else:
        x_p = jnp.zeros((n_p, c_in_p), jnp.float32).at[:n, :c_in].set(
            x.astype(jnp.float32))

    scale_p = jnp.zeros((1, c_in_p), jnp.float32).at[0, :c_in].set(scale)
    shift_p = jnp.zeros((1, c_in_p), jnp.float32).at[0, :c_in].set(shift)

    if c_in_p == c_in and c_out_p == c_out:
        w_p = weight.astype(matmul_dtype)
    else:
        w_p = jnp.zeros((c_in_p, c_out_p), matmul_dtype).at[:c_in, :c_out].set(
            weight.astype(matmul_dtype))

    if c_out_p == c_out:
        b_p = bias.astype(jnp.float32).reshape(1, c_out_p)
    else:
        b_p = jnp.zeros((1, c_out_p), jnp.float32).at[0, :c_out].set(
            bias.astype(jnp.float32))

    grid = (n_p // tile_n, c_out_p // tile_co)

    vmem_limit = int(min(max(_footprint_bytes(tile_n, tile_co, c_in_p) + (4 << 20),
                             16 << 20),
                         _vmem_capacity_bytes()))

    out_p = pl.pallas_call(
        dense_block_kernel,
        out_shape=jax.ShapeDtypeStruct((n_p, c_out_p), jnp.float32),
        grid=grid,
        in_specs=[
            pl.BlockSpec((tile_n, c_in_p), lambda i, j: (i, 0)),   # x (per batch tile)
            pl.BlockSpec((1, c_in_p), lambda i, j: (0, 0)),        # scale (resident)
            pl.BlockSpec((1, c_in_p), lambda i, j: (0, 0)),        # shift (resident)
            pl.BlockSpec((c_in_p, tile_co), lambda i, j: (0, j)),  # weight (per C_out tile)
            pl.BlockSpec((1, tile_co), lambda i, j: (0, j)),       # bias
        ],
        out_specs=pl.BlockSpec((tile_n, tile_co), lambda i, j: (i, j)),
        scratch_shapes=[pltpu.VMEM((tile_n, c_in_p), matmul_dtype)],
        compiler_params=pltpu.CompilerParams(
            # i (batch) parallel -> megacore sharding on v7x; j (C_out) arbitrary ->
            # sequential per core so the activation cache is valid.
            dimension_semantics=("parallel", "arbitrary"),
            vmem_limit_bytes=vmem_limit,
        ),
    )(x_p, scale_p, shift_p, w_p, b_p)

    return out_p[:n, :c_out]


def reference(x, gamma, beta, running_mean, running_var, weight, bias):
    inv_std = 1.0 / jnp.sqrt(running_var + BN_EPS)
    xn = (x - running_mean) * inv_std * gamma + beta
    h = jnp.maximum(xn, 0.0)
    return h @ weight + bias


if __name__ == "__main__":
    # Small shapes implied by the forward: x is (N, C_in) -> (N, C_out).
    N, C_IN, C_OUT = 8, 32, 16

    key = jax.random.PRNGKey(0)
    kx, kg, kb, km, kv, kw, kbias = jax.random.split(key, 7)

    x = jax.random.normal(kx, (N, C_IN), dtype=jnp.float32)

    # Deterministic synthetic parameters (no checkpoint load).
    gamma = 1.0 + 0.1 * jax.random.normal(kg, (C_IN,), dtype=jnp.float32)
    beta = 0.1 * jax.random.normal(kb, (C_IN,), dtype=jnp.float32)
    running_mean = 0.1 * jax.random.normal(km, (C_IN,), dtype=jnp.float32)
    running_var = jnp.abs(1.0 + 0.1 * jax.random.normal(kv, (C_IN,), dtype=jnp.float32))
    # PyTorch Linear weight is (out, in); we store the transpose (in, out).
    weight = (jax.random.normal(kw, (C_IN, C_OUT), dtype=jnp.float32)
              / jnp.sqrt(jnp.float32(C_IN)))
    bias = 0.1 * jax.random.normal(kbias, (C_OUT,), dtype=jnp.float32)

    out = dense_block(x, gamma, beta, running_mean, running_var, weight, bias)
    out = jax.block_until_ready(out)

    ref = reference(x, gamma, beta, running_mean, running_var, weight, bias)
    assert out.shape == (N, C_OUT), out.shape
    # Tolerance accounts for bf16 matmul operands (f32 accumulation).
    assert jnp.allclose(out, ref, atol=5e-2, rtol=5e-2), "mismatch vs reference"

    print("KERNEL_OK")
</pallas_src>

<mosaic_0001>
module attributes {stable_mosaic.version = 11 : i64} {
  func.func @dense_block_kernel(%arg0: i32, %arg1: i32, %arg2: memref<16x128xf32, #tpu.memory_space<vmem>>, %arg3: memref<1x128xf32, #tpu.memory_space<vmem>>, %arg4: memref<1x128xf32, #tpu.memory_space<vmem>>, %arg5: memref<128x128xbf16, #tpu.memory_space<vmem>>, %arg6: memref<1x128xf32, #tpu.memory_space<vmem>>, %arg7: memref<16x128xf32, #tpu.memory_space<vmem>>, %arg8: memref<16x128xbf16, #tpu.memory_space<vmem>>) attributes {dimension_semantics = [#tpu.dimension_semantics<parallel>, #tpu.dimension_semantics<arbitrary>], iteration_bounds = array<i64: 1, 1>, scalar_prefetch = 0 : i64, scratch_operands = 1 : i64, tpu.core_type = #tpu.core_type<tc>, window_params = [{transform_indices = @transform_0, window_bounds = array<i64: 16, 128>}, {pipeline_mode = #tpu.pipeline_mode<synchronous>, transform_indices = @transform_1, window_bounds = array<i64: 1, 128>}, {pipeline_mode = #tpu.pipeline_mode<synchronous>, transform_indices = @transform_2, window_bounds = array<i64: 1, 128>}, {transform_indices = @transform_3, window_bounds = array<i64: 128, 128>}, {transform_indices = @transform_4, window_bounds = array<i64: 1, 128>}, {transform_indices = @transform_5, window_bounds = array<i64: 16, 128>}]} {
    %c0_i32 = arith.constant 0 : i32
    %0 = arith.cmpi eq, %arg1, %c0_i32 : i32
    %1 = arith.extui %0 : i1 to i32
    %c0_i32_0 = arith.constant 0 : i32
    %2 = arith.cmpi ne, %1, %c0_i32_0 : i32
    scf.if %2 {
      %c0_8 = arith.constant 0 : index
      %c0_9 = arith.constant 0 : index
      %10 = vector.load %arg2[%c0_8, %c0_9] : memref<16x128xf32, #tpu.memory_space<vmem>>, vector<16x128xf32>
      %c0_10 = arith.constant 0 : index
      %c0_11 = arith.constant 0 : index
      %11 = vector.load %arg3[%c0_10, %c0_11] : memref<1x128xf32, #tpu.memory_space<vmem>>, vector<1x128xf32>
      %12 = vector.broadcast %11 : vector<1x128xf32> to vector<16x128xf32>
      %13 = arith.mulf %10, %12 : vector<16x128xf32>
      %c0_12 = arith.constant 0 : index
      %c0_13 = arith.constant 0 : index
      %14 = vector.load %arg4[%c0_12, %c0_13] : memref<1x128xf32, #tpu.memory_space<vmem>>, vector<1x128xf32>
      %15 = vector.broadcast %14 : vector<1x128xf32> to vector<16x128xf32>
      %16 = arith.addf %13, %15 : vector<16x128xf32>
      %cst_14 = arith.constant 0.000000e+00 : f32
      %17 = vector.broadcast %cst_14 : f32 to vector<16x128xf32>
      %18 = arith.maximumf %16, %17 : vector<16x128xf32>
      %19 = arith.truncf %18 : vector<16x128xf32> to vector<16x128xbf16>
      %c0_15 = arith.constant 0 : index
      %c0_16 = arith.constant 0 : index
      %20 = vector.load %arg8[%c0_15, %c0_16] : memref<16x128xbf16, #tpu.memory_space<vmem>>, vector<16x128xbf16>
      tpu.vector_store %arg8[%c0_15, %c0_16], %19 {strides = array<i32>} : memref<16x128xbf16, #tpu.memory_space<vmem>>, vector<16x128xbf16>,
    } else {
    }
    %c0 = arith.constant 0 : index
    %c0_1 = arith.constant 0 : index
    %3 = vector.load %arg8[%c0, %c0_1] : memref<16x128xbf16, #tpu.memory_space<vmem>>, vector<16x128xbf16>
    %c0_2 = arith.constant 0 : index
    %c0_3 = arith.constant 0 : index
    %4 = vector.load %arg5[%c0_2, %c0_3] : memref<128x128xbf16, #tpu.memory_space<vmem>>, vector<128x128xbf16>
    %cst = arith.constant dense<0.000000e+00> : vector<16x128xf32>
    %5 = tpu.matmul %3, %4, %cst {dimension_numbers = #tpu.dot_dimension_numbers<[1], [0], [0], [1], [0, 0, 1, 1], [], []>} : vector<16x128xbf16>, vector<128x128xbf16>, vector<16x128xf32> -> vector<16x128xf32>
    %c0_4 = arith.constant 0 : index
    %c0_5 = arith.constant 0 : index
    %6 = vector.load %arg6[%c0_4, %c0_5] : memref<1x128xf32, #tpu.memory_space<vmem>>, vector<1x128xf32>
    %7 = vector.broadcast %6 : vector<1x128xf32> to vector<16x128xf32>
    %8 = arith.addf %5, %7 : vector<16x128xf32>
    %c0_6 = arith.constant 0 : index
    %c0_7 = arith.constant 0 : index
    %9 = vector.load %arg7[%c0_6, %c0_7] : memref<16x128xf32, #tpu.memory_space<vmem>>, vector<16x128xf32>
    tpu.vector_store %arg7[%c0_6, %c0_7], %8 {strides = array<i32>} : memref<16x128xf32, #tpu.memory_space<vmem>>, vector<16x128xf32>,
    return
  }
  func.func @transform_0(%arg0: i32, %arg1: i32) -> (i32, i32) {
    %c0_i32 = arith.constant 0 : i32
    %c0_i32_0 = arith.constant 0 : i32
    return %arg0, %c0_i32 : i32, i32
  }
  func.func @transform_1(%arg0: i32, %arg1: i32) -> (i32, i32) {
    %c0_i32 = arith.constant 0 : i32
    %c0_i32_0 = arith.constant 0 : i32
    %c0_i32_1 = arith.constant 0 : i32
    return %c0_i32, %c0_i32_0 : i32, i32
  }
  func.func @transform_2(%arg0: i32, %arg1: i32) -> (i32, i32) {
    %c0_i32 = arith.constant 0 : i32
    %c0_i32_0 = arith.constant 0 : i32
    %c0_i32_1 = arith.constant 0 : i32
    return %c0_i32, %c0_i32_0 : i32, i32
  }
  func.func @transform_3(%arg0: i32, %arg1: i32) -> (i32, i32) {
    %c0_i32 = arith.constant 0 : i32
    %c0_i32_0 = arith.constant 0 : i32
    return %c0_i32, %arg1 : i32, i32
  }
  func.func @transform_4(%arg0: i32, %arg1: i32) -> (i32, i32) {
    %c0_i32 = arith.constant 0 : i32
    %c0_i32_0 = arith.constant 0 : i32
    return %c0_i32, %arg1 : i32, i32
  }
  func.func @transform_5(%arg0: i32, %arg1: i32) -> (i32, i32) {
    %c0_i32 = arith.constant 0 : i32
    return %arg0, %arg1 : i32, i32
  }
}

</mosaic_0001>

<llo_original>
// kernel: dense_block.1
$region0: #{dense_block.1}
  #allocation0 [shape = 'u32[]', space=smem, size = 0x4, offset = 0x4, fixed_abs, tag = 'smem constant byte address 0x4 - core index']
  #allocation1 [shape = 'u32[144,128]{1,0:T(1,128)}', space=vmem, size = 0x12000, scoped, tag = 'internal scratch']
  #allocation2 [shape = 'bf16[16,128]{1,0:T(16,128)(2,1)}', space=vmem, size = 0x1000, scoped, tag = 'scratch operand']
  %s0 = inlined_call_operand.vmem [shape: f32[16,128], index: 0, kind: input, shape index: {}]
  %s1 = inlined_call_operand.vmem [shape: f32[1,128], index: 1, kind: input, shape index: {}]
  %s2 = inlined_call_operand.vmem [shape: f32[1,128], index: 2, kind: input, shape index: {}]
  %s3 = inlined_call_operand.vmem [shape: bf16[128,128], index: 3, kind: input, shape index: {}]
  %s4 = inlined_call_operand.vmem [shape: f32[1,128], index: 4, kind: input, shape index: {}]
  %s5 = inlined_call_operand.vmem [shape: f32[16,128], index: 5, kind: output, shape index: {}]
  %s6 = sld [smem:[#allocation0]]
  $region34: #{dense_block.1} parent=0
    _
  %s8 = ssub.s32 1, %s6
  %s9 = scalar_select 0, %s8, %s6
  // Predicated region
  $region2: #{dense_block.1} parent=0 // pred_check
    _
  $region3: #{dense_block.1} parent=0 // pred_check_branch
    %11 = sbr.rel (0) target = $region5
  $region4: #{dense_block.1} parent=0 // pred_region
    _
  $region5: #{dense_block.1} parent=0 // pred_fallthru
    _
  // Predicated region
  $region6: #{dense_block.1} parent=0 // pred_check
    _
  $region7: #{dense_block.1} parent=0 // pred_check_branch
    %13 = sbr.rel (0) target = $region9
  $region8: #{dense_block.1} parent=0 // pred_region
    _
  $region9: #{dense_block.1} parent=0 // pred_fallthru
    _
  // Predicated region
  $region10: #{dense_block.1} parent=0 // pred_check
    _
  $region11: #{dense_block.1} parent=0 // pred_check_branch
    %15 = sbr.rel (0) target = $region13
  $region12: #{dense_block.1} parent=0 // pred_region
    _
  $region13: #{dense_block.1} parent=0 // pred_fallthru
    _
  // Predicated region
  $region14: #{dense_block.1} parent=0 // pred_check
    _
  $region15: #{dense_block.1} parent=0 // pred_check_branch
    %17 = sbr.rel (0) target = $region17
  $region16: #{dense_block.1} parent=0 // pred_region
    _
  $region17: #{dense_block.1} parent=0 // pred_fallthru
    _
  // Predicated region
  $region18: #{dense_block.1} parent=0 // pred_check
    _
  $region19: #{dense_block.1} parent=0 // pred_check_branch
    %19 = sbr.rel (0) target = $region21
  $region20: #{dense_block.1} parent=0 // pred_region
    _
  $region21: #{dense_block.1} parent=0 // pred_fallthru
    _
  %p21 = scmp.eq.s32.totalorder 0, 0
  // Predicated region
  $region22: #{dense_block.1} parent=0 // pred_check
    %p22 = pneg %p21
  $region23: #{dense_block.1} parent=0 // pred_check_branch
    %24 = sbr.rel (%p22) target = $region25
  $region24: #{dense_block.1} parent=0 // pred_region
    %v25 = vld [vmem:[%s0] sm:$0xff]
    %v26 = vld [vmem:[%s0 + $0x8] sm:$0xff]
    %v27 = vld [vmem:[%s1] sm:$0x1]
    %v29 = vlaneseq
    %v30 = vshrl.u32 %v29, 7
    %v31 = vsub.s32 0, %v30
    %v32 = vrot.slane %v27, %v31
    %v34 = vmul.f32 %v25, %v32
    %v35 = vmul.f32 %v26, %v32
    %v36 = vld [vmem:[%s2] sm:$0x1]
    %v38 = vlaneseq
    %v39 = vshrl.u32 %v38, 7
    %v40 = vsub.s32 0, %v39
    %v41 = vrot.slane %v36, %v40
    %v43 = vadd.f32 %v34, %v41
    %v44 = vadd.f32 %v35, %v41
    %v45 = vmax.f32 %v43, 0.0
    %v46 = vmax.f32 %v44, 0.0
    %v47 = vpack.c.bf16 %v46, %v45
    %48 = vst [vmem:[#allocation2] sm:$0xff] %v47
  $region25: #{dense_block.1} parent=0 // pred_fallthru
    _
  %v49 = vld [vmem:[#allocation2] sm:$0xff]
  %v50 = vld [vmem:[%s3] sm:$0xf]
  %v51 = vld [vmem:[%s3 + $0x4] sm:$0xf]
  %v52 = vld [vmem:[%s3 + $0x8] sm:$0xf]
  %v53 = vld [vmem:[%s3 + $0xc] sm:$0xf]
  %v54 = vld [vmem:[%s3 + $0x10] sm:$0xf]
  %v55 = vld [vmem:[%s3 + $0x14] sm:$0xf]
  %v56 = vld [vmem:[%s3 + $0x18] sm:$0xf]
  %v57 = vld [vmem:[%s3 + $0x1c] sm:$0xf]
  %v58 = vld [vmem:[%s3 + $0x20] sm:$0xf]
  %v59 = vld [vmem:[%s3 + $0x24] sm:$0xf]
  %v60 = vld [vmem:[%s3 + $0x28] sm:$0xf]
  %v61 = vld [vmem:[%s3 + $0x2c] sm:$0xf]
  %v62 = vld [vmem:[%s3 + $0x30] sm:$0xf]
  %v63 = vld [vmem:[%s3 + $0x34] sm:$0xf]
  %v64 = vld [vmem:[%s3 + $0x38] sm:$0xf]
  %v65 = vld [vmem:[%s3 + $0x3c] sm:$0xf]
  %v66 = vld [vmem:[%s4] sm:$0x1]
  %v68 = vlaneseq
  %v69 = vshrl.u32 %v68, 7
  %v70 = vsub.s32 0, %v69
  %v71 = vrot.slane %v66, %v70
  %v89 = vunpack.c.l.b16 %v50
  %v90 = vunpack.c.l.b16 %v51
  %v91 = vunpack.c.l.b16 %v52
  %v92 = vunpack.c.l.b16 %v53
  %v93 = vunpack.c.l.b16 %v54
  %v94 = vunpack.c.l.b16 %v55
  %v95 = vunpack.c.l.b16 %v56
  %v96 = vunpack.c.l.b16 %v57
  %v97 = vunpack.c.l.b16 %v58
  %v98 = vunpack.c.l.b16 %v59
  %v99 = vunpack.c.l.b16 %v60
  %v100 = vunpack.c.l.b16 %v61
  %v101 = vunpack.c.l.b16 %v62
  %v102 = vunpack.c.l.b16 %v63
  %v103 = vunpack.c.l.b16 %v64
  %v104 = vunpack.c.l.b16 %v65
  %v105 = vpack.c.b16 %v90, %v89
  %v106 = vpack.c.b16 %v92, %v91
  %v107 = vpack.c.b16 %v94, %v93
  %v108 = vpack.c.b16 %v96, %v95
  %v109 = vpack.c.b16 %v98, %v97
  %v110 = vpack.c.b16 %v100, %v99
  %v111 = vpack.c.b16 %v102, %v101
  %v112 = vpack.c.b16 %v104, %v103
  %121 = vmatprep.subr.bf16.mxu0 0
  %122 = vmatpush1.bf16.msra.mxu0 %v105
  %123 = vmatprep.subr.bf16.mxu0 0
  %124 = vmatpush1.bf16.msra.mxu0 %v106
  %125 = vmatprep.subr.bf16.mxu0 0
  %126 = vmatpush1.bf16.msra.mxu0 %v107
  %127 = vmatprep.subr.bf16.mxu0 0
  %128 = vmatpush1.bf16.msra.mxu0 %v108
  %129 = vmatprep.subr.bf16.mxu0 0
  %130 = vmatpush1.bf16.msra.mxu0 %v109
  %131 = vmatprep.subr.bf16.mxu0 0
  %132 = vmatpush1.bf16.msra.mxu0 %v110
  %133 = vmatprep.subr.bf16.mxu0 0
  %134 = vmatpush1.bf16.msra.mxu0 %v111
  %135 = vmatprep.subr.bf16.mxu0 0
  %136 = vmatpush1.bf16.msra.mxu0 %v112
  %137 = vmatprep.subr.bf16.mxu0 0
  %138 = vmatpush1.bf16.msra.mxu0 0
  %139 = vmatprep.subr.bf16.mxu0 0
  %140 = vmatpush1.bf16.msra.mxu0 0
  %141 = vmatprep.subr.bf16.mxu0 0
  %142 = vmatpush1.bf16.msra.mxu0 0
  %143 = vmatprep.subr.bf16.mxu0 0
  %144 = vmatpush1.bf16.msra.mxu0 0
  %145 = vmatprep.subr.bf16.mxu0 0
  %146 = vmatpush1.bf16.msra.mxu0 0
  %147 = vmatprep.subr.bf16.mxu0 0
  %148 = vmatpush1.bf16.msra.mxu0 0
  %149 = vmatprep.subr.bf16.mxu0 0
  %150 = vmatpush1.bf16.msra.mxu0 0
  %151 = vmatprep.subr.bf16.mxu0 0
  %152 = vmatpush1.bf16.msra.mxu0 0
  %153 = vmatprep.mubr.bf16.mxu0 0
  %154 = vmatmul.mubr.bf16.gmra.mrb[0].mxu0 %v49
  %v155 = vpop.f32.mrb[0].mxu0
  %v156 = vadd.f32 %v71, %v155
  %v157 = vpop.f32.mrb[0].mxu0
  %v158 = vpop.f32.mrb[0].mxu0
  %v159 = vadd.f32 %v71, %v158
  %v160 = vpop.f32.mrb[0].mxu0
  %161 = vdwg.mxu0
  %162 = vst [vmem:[%s5] sm:$0xff] %v156
  %163 = vst [vmem:[%s5 + $0x8] sm:$0xff] %v159
  // Predicated region
  $region26: #{dense_block.1} parent=0 // pred_check
    _
  $region27: #{dense_block.1} parent=0 // pred_check_branch
    %165 = sbr.rel (0) target = $region29
  $region28: #{dense_block.1} parent=0 // pred_region
    _
  $region29: #{dense_block.1} parent=0 // pred_fallthru
    _
  // Predicated region
  $region30: #{dense_block.1} parent=0 // pred_check
    _
  $region31: #{dense_block.1} parent=0 // pred_check_branch
    %167 = sbr.rel (0) target = $region33
  $region32: #{dense_block.1} parent=0 // pred_region
    _
  $region33: #{dense_block.1} parent=0 // pred_fallthru
    _

</llo_original>
